<compile_context>
chip_gen: v5e
topology: v5e:2x2
jax: 0.10.0
libtpu: 0.0.40
codegen_flags: <defaults>
</compile_context>

<pallas_src>
import jax
import jax.numpy as jnp
from jax.experimental import pallas as pl
from jax.experimental.pallas import tpu as pltpu

MAPPING = {0: 'add', 1: 'mul', 2: 'concat', 3: 'ffn', 4: 'tanh',
           5: 'sigmoid', 6: 'identity', 7: 'neg'}
MAX_NUM_NODE = 12

_BINARY = ('add', 'mul', 'concat')
_UNARY_FNS = {'tanh': jnp.tanh,
              'sigmoid': jax.nn.sigmoid,
              'neg': lambda x: -x,
              'identity': lambda x: x}

_VMEM_TILE_BUDGET = 32 * 1024 * 1024   # tile-selection budget (fits v7x 64 MiB)
_VMEM_LIMIT_BYTES = 48 * 1024 * 1024   # scoped VMEM limit (>= default on all gens)


# ---------------------------------------------------------------------------
# Static graph analysis helpers
# ---------------------------------------------------------------------------

def _num_nodes(NAS):
    """Mirrors `if 3*(i+1) > len(NAS): break` over MAX_NUM_NODE nodes."""
    return min(MAX_NUM_NODE, len(NAS) // 3)


def _node_list(NAS):
    n = _num_nodes(NAS)
    return [(int(NAS[3 * i]), int(NAS[3 * i + 1]), MAPPING[int(NAS[3 * i + 2])])
            for i in range(n)]


# ---------------------------------------------------------------------------
# Fused Pallas kernel: the entire NAS graph in one body
# ---------------------------------------------------------------------------

def _make_fused_kernel(nodes, n_init, used_inits, ffn_live, live, split):
    """Build a kernel whose body unrolls the static NAS routing.

    Ref order: used init_state refs..., (w_bf16, b_f32) per live FFN node...,
    out_ref.

    `split` is None, or (cx1, cx2, unary_name|None): the final result is the
    (optionally unary-transformed) concatenation of states cx1 and cx2 and is
    written as two direct slice stores (no materialized concat).
    """
    n_used = len(used_inits)
    n_ffn = len(ffn_live)
    ffn_slot = {node_i: k for k, node_i in enumerate(ffn_live)}
    n_nodes = len(nodes)
    last = n_init + n_nodes - 1

    skip = set()
    if split is not None:
        skip.add(last)                       # final node handled by split store
        if split[2] is not None:             # final unary's concat producer is
            skip.add(nodes[-1][0])           # consumed only here -> never built

    def kernel(*refs):
        init_refs = refs[:n_used]
        wb_refs = refs[n_used:n_used + 2 * n_ffn]
        out_ref = refs[-1]

        # states keyed by the original global state index
        states = {gi: init_refs[p][...] for p, gi in enumerate(used_inits)}

        for i in range(n_nodes):
            gi = n_init + i
            if gi not in live or gi in skip:
                continue                       # dead-node elimination / split
            x1, x2, name = nodes[i]
            if name == 'add':
                v = states[x1] + states[x2]
            elif name == 'mul':
                v = states[x1] * states[x2]
            elif name == 'concat':
                v = jnp.concatenate([states[x1], states[x2]], axis=-1)
            elif name == 'ffn':
                k = ffn_slot[i]
                w = wb_refs[2 * k][...]        # bf16 weight -> MXU-native
                b = wb_refs[2 * k + 1][...]    # f32 bias
                acc = jnp.dot(states[x1].astype(jnp.bfloat16), w,
                              preferred_element_type=jnp.float32)
                v = jax.nn.sigmoid(acc + b)    # f32 in vregs
            else:                              # tanh / sigmoid / neg / identity
                v = _UNARY_FNS[name](states[x1])
            states[gi] = v

        if split is None:
            out_ref[...] = states[last].astype(out_ref.dtype)
        else:
            cx1, cx2, uname = split
            h1, h2 = states[cx1], states[cx2]
            if uname is not None:
                h1 = _UNARY_FNS[uname](h1)
                h2 = _UNARY_FNS[uname](h2)
            w1 = h1.shape[-1]
            out_ref[:, :w1] = h1.astype(out_ref.dtype)
            out_ref[:, w1:] = h2.astype(out_ref.dtype)

    return kernel


# ---------------------------------------------------------------------------
# Wrapper: static analysis + pallas_call
# ---------------------------------------------------------------------------

def graph_forward(init_states, NAS, params, *, b_tile=512):
    """Fused forward of Graph.forward for a static NAS encoding.

    init_states: list of [B, D_i] f32 arrays (feature widths ideally x128)
    NAS:         flat static list [x1, x2, op, x1, x2, op, ...]
    params:      dict {node_index: (w [D_in,D_out] f32, b [1,D_out] f32)}
                 for every FFN node in the NAS
    """
    assert len(NAS) >= 3, "NAS must encode at least one node"
    n_init = len(init_states)
    B = init_states[0].shape[0]
    nodes = _node_list(NAS)
    n_nodes = len(nodes)

    # ---- width propagation + validation (per-FFN output width from params)
    widths = [int(s.shape[1]) for s in init_states]
    for i, (x1, x2, name) in enumerate(nodes):
        limit = n_init + i
        assert 0 <= x1 < limit, f"node {i}: x1={x1} out of range"
        if name in _BINARY:
            assert 0 <= x2 < limit, f"node {i}: x2={x2} out of range"
        if name == 'ffn':
            assert i in params, f"missing FFN params for node {i}"
            w, _ = params[i]
            assert w.shape[0] == widths[x1], "FFN weight in-dim mismatch"
            widths.append(int(w.shape[1]))
        elif name == 'concat':
            widths.append(widths[x1] + widths[x2])
        elif name in ('add', 'mul'):
            assert widths[x1] == widths[x2], f"node {i}: operand width mismatch"
            widths.append(widths[x1])
        else:
            widths.append(widths[x1])

    last = n_init + n_nodes - 1
    out_w = widths[last]

    # ---- liveness (only the chain feeding the returned state is computed)
    live = set()
    stack = [last]
    while stack:
        gi = stack.pop()
        if gi in live:
            continue
        live.add(gi)
        if gi >= n_init:
            x1, x2, name = nodes[gi - n_init]
            stack.append(x1)
            if name in _BINARY:
                stack.append(x2)
    used_inits = sorted(gi for gi in live if gi < n_init)

    consumers = {gi: 0 for gi in range(n_init + n_nodes)}
    for i, (x1, x2, name) in enumerate(nodes):
        if (n_init + i) not in live:
            continue
        consumers[x1] += 1
        if name in _BINARY:
            consumers[x2] += 1

    # ---- split-final detection (skip materializing a trailing concat)
    fx1, _, fname = nodes[-1]
    split = None
    if fname == 'concat':
        split = (nodes[-1][0], nodes[-1][1], None)
    elif fname in _UNARY_FNS and fx1 >= n_init:
        px1, px2, pname = nodes[fx1 - n_init]
        if pname == 'concat' and consumers[fx1] == 1:
            split = (px1, px2, fname)

    # ---- live FFN weights only, cast to bf16 for the MXU
    ffn_live = [i for i, (_, _, nm) in enumerate(nodes)
                if nm == 'ffn' and (n_init + i) in live]
    wb_args, wb_specs = [], []
    for i in ffn_live:
        w, b = params[i]
        w_bf16 = w.astype(jnp.bfloat16)
        b_f32 = b.astype(jnp.float32)
        wb_args.extend([w_bf16, b_f32])
        # constant across the batch grid -> single-buffered VMEM residents
        wb_specs.append(pl.BlockSpec(w_bf16.shape, lambda i_: (0, 0),
                                     pipeline_mode=pl.Buffered(1)))
        wb_specs.append(pl.BlockSpec(b_f32.shape, lambda i_: (0, 0),
                                     pipeline_mode=pl.Buffered(1)))

    # ---- batch-tile selection under a VMEM budget, keeping grid >= 2 steps
    live_node_widths = [widths[n_init + i] for i in range(n_nodes)
                        if (n_init + i) in live]
    weight_bytes = sum(int(a.size) * a.dtype.itemsize for a in wb_args)

    def vmem_est(bt):
        in_b = sum(2 * bt * widths[gi] * 4 for gi in used_inits)   # dbl-buffered
        out_b = 2 * bt * out_w * 4
        tmp_b = sum(bt * w * 4 for w in live_node_widths)          # intermediates
        return in_b + out_b + weight_bytes + tmp_b

    cap = min(b_tile, B)
    if B >= 16:
        cap = min(cap, B // 2)       # >= 2 grid steps: dual-TC + pipelining
    bt = None
    t = (cap // 8) * 8
    while t >= 8:
        if B % t == 0 and vmem_est(t) <= _VMEM_TILE_BUDGET:
            bt = t
            break
        t -= 8
    if bt is None:
        bt = B                       # tiny / awkward batch: single full block
    grid = (B // bt,)

    # ---- cost estimate (lets XLA schedule around the fused call)
    flops = sum(2 * B * params[i][0].shape[0] * params[i][0].shape[1]
                for i in ffn_live)
    transc = B * sum(widths[n_init + i] for i, (_, _, nm) in enumerate(nodes)
                     if (n_init + i) in live and nm in ('ffn', 'sigmoid', 'tanh'))
    bytes_acc = (sum(B * widths[gi] * 4 for gi in used_inits)
                 + B * out_w * 4 + weight_bytes)
    cost = pl.CostEstimate(flops=int(flops), transcendentals=int(transc),
                           bytes_accessed=int(bytes_acc))

    kernel = _make_fused_kernel(nodes, n_init, used_inits, ffn_live, live, split)

    in_specs = [pl.BlockSpec((bt, widths[gi]), lambda i: (i, 0))
                for gi in used_inits] + wb_specs
    args = [init_states[gi] for gi in used_inits] + wb_args

    return pl.pallas_call(
        kernel,
        out_shape=jax.ShapeDtypeStruct((B, out_w), init_states[0].dtype),
        grid=grid,
        in_specs=in_specs,
        out_specs=pl.BlockSpec((bt, out_w), lambda i: (i, 0)),
        compiler_params=pltpu.CompilerParams(
            dimension_semantics=("parallel",),
            vmem_limit_bytes=_VMEM_LIMIT_BYTES),
        cost_estimate=cost,
    )(*args)


# ---------------------------------------------------------------------------
# Parameters (one FFN weight/bias per FFN node actually present in the NAS)
# ---------------------------------------------------------------------------

def init_graph_params(key, d, NAS, n_init=2):
    nodes = _node_list(NAS)
    widths = [d] * n_init
    params = {}
    for i, (x1, x2, name) in enumerate(nodes):
        if name == 'ffn':
            d_in = widths[x1]
            kw, kb = jax.random.split(jax.random.fold_in(key, i))
            w = jax.random.normal(kw, (d_in, d), jnp.float32) / jnp.sqrt(d_in)
            b = jax.random.normal(kb, (1, d), jnp.float32) * 0.01
            params[i] = (w, b)
            widths.append(d)
        elif name == 'concat':
            widths.append(widths[x1] + widths[x2])
        else:
            widths.append(widths[x1])
    return params


# ---------------------------------------------------------------------------
# Plain-JAX reference (same semantics incl. bf16 MXU path, for validation)
# ---------------------------------------------------------------------------

def _reference(init_states, NAS, params):
    states = list(init_states)
    state = None
    for i, (x1, x2, name) in enumerate(_node_list(NAS)):
        if name == 'add':
            state = states[x1] + states[x2]
        elif name == 'mul':
            state = states[x1] * states[x2]
        elif name == 'concat':
            state = jnp.concatenate([states[x1], states[x2]], axis=-1)
        elif name == 'ffn':
            w, b = params[i]
            acc = jnp.dot(states[x1].astype(jnp.bfloat16),
                          w.astype(jnp.bfloat16),
                          preferred_element_type=jnp.float32)
            state = jax.nn.sigmoid(acc + b.astype(jnp.float32))
        elif name == 'tanh':
            state = jnp.tanh(states[x1])
        elif name == 'sigmoid':
            state = jax.nn.sigmoid(states[x1])
        elif name == 'neg':
            state = -states[x1]
        else:
            state = states[x1]
        states.append(state)
    return state


if __name__ == "__main__":
    key = jax.random.PRNGKey(0)
    B, D = 256, 128                  # small, lane-aligned; tile -> 128 x 2 steps
    k0, k1, kp, kp2 = jax.random.split(key, 4)
    s0 = jax.random.normal(k0, (B, D), jnp.float32)
    s1 = jax.random.normal(k1, (B, D), jnp.float32)

    # Test 1: ffn -> add -> concat -> tanh (exercises the fused split store).
    # node 0: ffn(s0)          -> state2 (D)
    # node 1: add(s1, state2)  -> state3 (D)
    # node 2: concat(s0, s3)   -> state4 (2D)
    # node 3: tanh(state4)     -> state5 (2D)   <- returned
    NAS1 = [0, 1, 3,
            1, 2, 0,
            0, 3, 2,
            4, 0, 4]
    params1 = init_graph_params(kp, D, NAS1)
    out1 = jax.block_until_ready(graph_forward([s0, s1], NAS1, params1))
    exp1 = _reference([s0, s1], NAS1, params1)
    assert out1.shape == exp1.shape and out1.dtype == exp1.dtype
    assert jnp.allclose(out1, exp1, atol=2e-3, rtol=2e-3)

    # Test 2: mul -> neg -> (dead add) -> ffn -> sigmoid (non-split path + DCE).
    NAS2 = [0, 1, 1,
            2, 0, 7,
            0, 1, 0,          # dead node: never consumed downstream
            3, 0, 3,
            5, 0, 5]
    params2 = init_graph_params(kp2, D, NAS2)
    out2 = jax.block_until_ready(graph_forward([s0, s1], NAS2, params2))
    exp2 = _reference([s0, s1], NAS2, params2)
    assert out2.shape == exp2.shape and out2.dtype == exp2.dtype
    assert jnp.allclose(out2, exp2, atol=2e-3, rtol=2e-3)

    print("KERNEL_OK")
</pallas_src>

<mosaic_0001>
module attributes {stable_mosaic.version = 11 : i64} {
  func.func @kernel(%arg0: i32, %arg1: memref<128x128xf32, #tpu.memory_space<vmem>>, %arg2: memref<128x128xf32, #tpu.memory_space<vmem>>, %arg3: memref<128x128xbf16, #tpu.memory_space<vmem>>, %arg4: memref<1x128xf32, #tpu.memory_space<vmem>>, %arg5: memref<128x256xf32, #tpu.memory_space<vmem>>) attributes {dimension_semantics = [#tpu.dimension_semantics<parallel>], iteration_bounds = array<i64: 2>, scalar_prefetch = 0 : i64, scratch_operands = 0 : i64, tpu.core_type = #tpu.core_type<tc>, window_params = [{transform_indices = @transform_0, window_bounds = array<i64: 128, 128>}, {transform_indices = @transform_1, window_bounds = array<i64: 128, 128>}, {pipeline_mode = #tpu.pipeline_mode<synchronous>, transform_indices = @transform_2, window_bounds = array<i64: 128, 128>}, {pipeline_mode = #tpu.pipeline_mode<synchronous>, transform_indices = @transform_3, window_bounds = array<i64: 1, 128>}, {transform_indices = @transform_4, window_bounds = array<i64: 128, 256>}]} {
    %c0 = arith.constant 0 : index
    %c0_0 = arith.constant 0 : index
    %0 = vector.load %arg1[%c0, %c0_0] : memref<128x128xf32, #tpu.memory_space<vmem>>, vector<128x128xf32>
    %c0_1 = arith.constant 0 : index
    %c0_2 = arith.constant 0 : index
    %1 = vector.load %arg2[%c0_1, %c0_2] : memref<128x128xf32, #tpu.memory_space<vmem>>, vector<128x128xf32>
    %c0_3 = arith.constant 0 : index
    %c0_4 = arith.constant 0 : index
    %2 = vector.load %arg3[%c0_3, %c0_4] : memref<128x128xbf16, #tpu.memory_space<vmem>>, vector<128x128xbf16>
    %c0_5 = arith.constant 0 : index
    %c0_6 = arith.constant 0 : index
    %3 = vector.load %arg4[%c0_5, %c0_6] : memref<1x128xf32, #tpu.memory_space<vmem>>, vector<1x128xf32>
    %4 = arith.truncf %0 : vector<128x128xf32> to vector<128x128xbf16>
    %cst = arith.constant dense<0.000000e+00> : vector<128x128xf32>
    %5 = tpu.matmul %4, %2, %cst {dimension_numbers = #tpu.dot_dimension_numbers<[1], [0], [0], [1], [0, 0, 1, 1], [], []>} : vector<128x128xbf16>, vector<128x128xbf16>, vector<128x128xf32> -> vector<128x128xf32>
    %6 = vector.broadcast %3 : vector<1x128xf32> to vector<128x128xf32>
    %7 = arith.addf %5, %6 : vector<128x128xf32>
    %8 = arith.negf %7 : vector<128x128xf32>
    %9 = math.exp %8 : vector<128x128xf32>
    %cst_7 = arith.constant 1.000000e+00 : f32
    %10 = vector.broadcast %cst_7 : f32 to vector<128x128xf32>
    %11 = arith.addf %10, %9 : vector<128x128xf32>
    %12 = arith.divf %10, %11 : vector<128x128xf32>
    %13 = arith.addf %1, %12 : vector<128x128xf32>
    %14 = math.tanh %0 : vector<128x128xf32>
    %15 = math.tanh %13 : vector<128x128xf32>
    %c0_8 = arith.constant 0 : index
    %c0_9 = arith.constant 0 : index
    %16 = vector.load %arg5[%c0_8, %c0_9] : memref<128x256xf32, #tpu.memory_space<vmem>>, vector<128x128xf32>
    tpu.vector_store %arg5[%c0_8, %c0_9], %14 {strides = array<i32>} : memref<128x256xf32, #tpu.memory_space<vmem>>, vector<128x128xf32>,
    %c0_10 = arith.constant 0 : index
    %c128 = arith.constant 128 : index
    %17 = vector.load %arg5[%c0_10, %c128] : memref<128x256xf32, #tpu.memory_space<vmem>>, vector<128x128xf32>
    tpu.vector_store %arg5[%c0_10, %c128], %15 {strides = array<i32>} : memref<128x256xf32, #tpu.memory_space<vmem>>, vector<128x128xf32>,
    return
  }
  func.func @transform_0(%arg0: i32) -> (i32, i32) {
    %c0_i32 = arith.constant 0 : i32
    %c0_i32_0 = arith.constant 0 : i32
    return %arg0, %c0_i32 : i32, i32
  }
  func.func @transform_1(%arg0: i32) -> (i32, i32) {
    %c0_i32 = arith.constant 0 : i32
    %c0_i32_0 = arith.constant 0 : i32
    return %arg0, %c0_i32 : i32, i32
  }
  func.func @transform_2(%arg0: i32) -> (i32, i32) {
    %c0_i32 = arith.constant 0 : i32
    %c0_i32_0 = arith.constant 0 : i32
    %c0_i32_1 = arith.constant 0 : i32
    return %c0_i32, %c0_i32_0 : i32, i32
  }
  func.func @transform_3(%arg0: i32) -> (i32, i32) {
    %c0_i32 = arith.constant 0 : i32
    %c0_i32_0 = arith.constant 0 : i32
    %c0_i32_1 = arith.constant 0 : i32
    return %c0_i32, %c0_i32_0 : i32, i32
  }
  func.func @transform_4(%arg0: i32) -> (i32, i32) {
    %c0_i32 = arith.constant 0 : i32
    %c0_i32_0 = arith.constant 0 : i32
    return %arg0, %c0_i32 : i32, i32
  }
}

</mosaic_0001>

<llo_original>
// kernel: tpu_custom_call.1
$region0: #{tpu_custom_call.1}
  #allocation0 [shape = 'u32[]', space=smem, size = 0x4, offset = 0x4, fixed_abs, tag = 'smem constant byte address 0x4 - core index']
  #allocation1 [shape = 'u32[72,128]{1,0:T(1,128)}', space=vmem, size = 0x9000, scoped, tag = 'internal scratch']
  %s0 = inlined_call_operand.hbm [shape: f32[256,128], index: 0, kind: input, shape index: {}]
  %s1 = inlined_call_operand.hbm [shape: f32[256,128], index: 1, kind: input, shape index: {}]
  %s2 = inlined_call_operand.hbm [shape: bf16[128,128], index: 2, kind: input, shape index: {}]
  %s3 = inlined_call_operand.vmem [shape: f32[1,128], index: 3, kind: input, shape index: {}]
  %s4 = inlined_call_operand.hbm [shape: f32[256,256], index: 4, kind: output, shape index: {}]
  %s5 = sld [smem:[#allocation0]]
  $region61: #{tpu_custom_call.1} parent=0
    _
  %s7 = ssub.s32 1, %s5
  %s8 = scalar_select 0, %s7, %s5
  $region1: #{tpu_custom_call.1} parent=0
    #allocation2 [shape = 'u8[131072]{0}', space=vmem, size = 0x20000, scoped, tag = 'input window, operand 0']
    #allocation3 [shape = 's32[2]{0}', space=sflag, size = 0x8, scoped, tag = 'scoped memory for tpu_custom_call.1']
    #allocation4 [shape = 's32[2]{0}', space=sflag, size = 0x8, scoped, tag = 'scoped memory for tpu_custom_call.1']
    #allocation5 [shape = 'u8[131072]{0}', space=vmem, size = 0x20000, scoped, tag = 'input window, operand 1']
    #allocation6 [shape = 's32[2]{0}', space=sflag, size = 0x8, scoped, tag = 'scoped memory for tpu_custom_call.1']
    #allocation7 [shape = 'u8[32768]{0}', space=vmem, size = 0x8000, scoped, tag = 'input window, operand 2, single buffered']
    #allocation8 [shape = 'u8[262144]{0}', space=vmem, size = 0x40000, scoped, tag = 'output window, operand 0']
    %9 = vsyncpa [#allocation3], 0
    %s10 = scalar_lea.sflag [#allocation3], 1
    %11 = vsyncpa %s10, 0
    %12 = vsyncpa [#allocation6], 0
    %s13 = scalar_lea.sflag [#allocation6], 1
    %14 = vsyncpa %s13, 0
    %15 = vsyncpa [#allocation4], 0
    %s16 = scalar_lea.sflag [#allocation4], 1
    %17 = vsyncpa %s16, 0
    loop: start=0, step=1, limit=4
    $region2: #{tpu_custom_call.1} parent=1 // loop_pre_header
      _
    $region3: #{tpu_custom_call.1} parent=1 // loop_header
      %s19 = sphi 0, %s23
      %p20 = scmp.ge.s32.totalorder %s19, 4
      %s29 = sphi 0, %s31
      %s32 = sphi 0, %s29
      %s33 = sphi 0, %s32
      %s49 = sphi 0, %s33
      %s55 = sphi 0, %s57
      %s58 = sphi 0, %s55
      %s59 = sphi 0, %s58
      %s75 = sphi 0, %s59
      %s79 = sphi 0, %s79
      %s81 = sphi 0, %s79
      %s82 = sphi 0, %s81
      %s96 = sphi 0, %s82
      %s100 = sphi 0, %s100
      %s102 = sphi 0, %s100
      %s103 = sphi 0, %s102
      %s117 = sphi 0, %s103
      %s123 = sphi 0, %s125
      %s126 = sphi 0, %s123
      %s127 = sphi 0, %s126
      %s143 = sphi 0, %s127
    $region4: #{tpu_custom_call.1} parent=1 // loop_header_branch
      %22 = sbr.rel (%p20) target = $region8
    $region5: #{tpu_custom_call.1} parent=1 // loop_body
      %s24 = ssub.s32 %s19, 1
      %s25 = ssub.s32 %s19, 2
      %s26 = sadd.s32 %s19, 1
      %s27 = ssub.s32 %s19, %s26
      %p28 = scmp.eq.s32.totalorder %s27, 0
      %s30 = sadd.s32 %s29, 1
      %s31 = scalar_select %p28, %s29, %s30
      %p34 = pneg %p28
      %p35 = scmp.eq.s32.totalorder %s19, 1
      %p36 = por %p34, %p35
      %p37 = scmp.ne.s32.totalorder %s29, %s32
      %p38 = scmp.eq.s32.totalorder %s19, 0
      %p39 = por %p37, %p38
      %p40 = scmp.ne.s32.totalorder %s29, %s32
      %p41 = scmp.eq.s32.totalorder %s24, 1
      %p42 = por %p40, %p41
      %p43 = scmp.ne.s32.totalorder %s32, %s33
      %p44 = scmp.eq.s32.totalorder %s24, 0
      %p45 = por %p43, %p44
      %p46 = scmp.ne.s32.totalorder %s32, %s33
      %p47 = scmp.eq.s32.totalorder %s25, 1
      %p48 = por %p46, %p47
      %p50 = scmp.ne.s32.totalorder %s33, %s49
      %p51 = scmp.eq.s32.totalorder %s25, 0
      %p52 = por %p50, %p51
      %s53 = ssub.s32 %s19, %s26
      %p54 = scmp.eq.s32.totalorder %s53, 0
      %s56 = sadd.s32 %s55, 1
      %s57 = scalar_select %p54, %s55, %s56
      %p60 = pneg %p54
      %p61 = scmp.eq.s32.totalorder %s19, 1
      %p62 = por %p60, %p61
      %p63 = scmp.ne.s32.totalorder %s55, %s58
      %p64 = scmp.eq.s32.totalorder %s19, 0
      %p65 = por %p63, %p64
      %p66 = scmp.ne.s32.totalorder %s55, %s58
      %p67 = scmp.eq.s32.totalorder %s24, 1
      %p68 = por %p66, %p67
      %p69 = scmp.ne.s32.totalorder %s58, %s59
      %p70 = scmp.eq.s32.totalorder %s24, 0
      %p71 = por %p69, %p70
      %p72 = scmp.ne.s32.totalorder %s58, %s59
      %p73 = scmp.eq.s32.totalorder %s25, 1
      %p74 = por %p72, %p73
      %p76 = scmp.ne.s32.totalorder %s59, %s75
      %p77 = scmp.eq.s32.totalorder %s25, 0
      %p78 = por %p76, %p77
      %s80 = sadd.s32 %s79, 1
      %p83 = scmp.eq.s32.totalorder %s19, 1
      %p84 = scmp.ne.s32.totalorder %s79, %s81
      %p85 = scmp.eq.s32.totalorder %s19, 0
      %p86 = por %p84, %p85
      %p87 = scmp.ne.s32.totalorder %s79, %s81
      %p88 = scmp.eq.s32.totalorder %s24, 1
      %p89 = por %p87, %p88
      %p90 = scmp.ne.s32.totalorder %s81, %s82
      %p91 = scmp.eq.s32.totalorder %s24, 0
      %p92 = por %p90, %p91
      %p93 = scmp.ne.s32.totalorder %s81, %s82
      %p94 = scmp.eq.s32.totalorder %s25, 1
      %p95 = por %p93, %p94
      %p97 = scmp.ne.s32.totalorder %s82, %s96
      %p98 = scmp.eq.s32.totalorder %s25, 0
      %p99 = por %p97, %p98
      %s101 = sadd.s32 %s100, 1
      %p104 = scmp.eq.s32.totalorder %s19, 1
      %p105 = scmp.ne.s32.totalorder %s100, %s102
      %p106 = scmp.eq.s32.totalorder %s19, 0
      %p107 = por %p105, %p106
      %p108 = scmp.ne.s32.totalorder %s100, %s102
      %p109 = scmp.eq.s32.totalorder %s24, 1
      %p110 = por %p108, %p109
      %p111 = scmp.ne.s32.totalorder %s102, %s103
      %p112 = scmp.eq.s32.totalorder %s24, 0
      %p113 = por %p111, %p112
      %p114 = scmp.ne.s32.totalorder %s102, %s103
      %p115 = scmp.eq.s32.totalorder %s25, 1
      %p116 = por %p114, %p115
      %p118 = scmp.ne.s32.totalorder %s103, %s117
      %p119 = scmp.eq.s32.totalorder %s25, 0
      %p120 = por %p118, %p119
      %s121 = ssub.s32 %s19, %s26
      %p122 = scmp.eq.s32.totalorder %s121, 0
      %s124 = sadd.s32 %s123, 1
      %s125 = scalar_select %p122, %s123, %s124
      %p128 = pneg %p122
      %p129 = scmp.eq.s32.totalorder %s19, 1
      %p130 = por %p128, %p129
      %p131 = scmp.ne.s32.totalorder %s123, %s126
      %p132 = scmp.eq.s32.totalorder %s19, 0
      %p133 = por %p131, %p132
      %p134 = scmp.ne.s32.totalorder %s123, %s126
      %p135 = scmp.eq.s32.totalorder %s24, 1
      %p136 = por %p134, %p135
      %p137 = scmp.ne.s32.totalorder %s126, %s127
      %p138 = scmp.eq.s32.totalorder %s24, 0
      %p139 = por %p137, %p138
      %p140 = scmp.ne.s32.totalorder %s126, %s127
      %p141 = scmp.eq.s32.totalorder %s25, 1
      %p142 = por %p140, %p141
      %p144 = scmp.ne.s32.totalorder %s127, %s143
      %p145 = scmp.eq.s32.totalorder %s25, 0
      %p146 = por %p144, %p145
      %p147 = scmp.le.s32.totalorder 1, %s19
      %p148 = scmp.lt.s32.totalorder %s19, 3
      %p149 = pnand %p147, %p148
      %p150 = pneg %p149
      // Predicated region
      $region9: #{tpu_custom_call.1} parent=5 // pred_check
        _
      $region10: #{tpu_custom_call.1} parent=5 // pred_check_branch
        %152 = sbr.rel (%p149) target = $region12
      $region11: #{tpu_custom_call.1} parent=5 // pred_region
        %s153 = ssub.s32 %s19, 1
        // Predicated region
        $region13: #{tpu_custom_call.1} parent=11 // pred_check
          %p154 = pneg %p92
        $region14: #{tpu_custom_call.1} parent=11 // pred_check_branch
          %156 = sbr.rel (%p154) target = $region16
        $region15: #{tpu_custom_call.1} parent=11 // pred_region
          %158 = vsyncadd [#allocation6], 0
          %s159 = sshll.u32 %s2, 4
          %s160 = int_to_ptr.hbm [resolvable:$true] %s159
          %s161 = sshll.u32 [#allocation7], 4
          %s162 = int_to_ptr.vmem [resolvable:$true] %s161
          %167 = dma.hbm_to_vmem [thread:$0]  %s160, 1024, %s162, [#allocation6], 64, 64, 4
        $region16: #{tpu_custom_call.1} parent=11 // pred_fallthru
          _
        // Predicated region
        $region17: #{tpu_custom_call.1} parent=11 // pred_check
          %p168 = pneg %p113
        $region18: #{tpu_custom_call.1} parent=11 // pred_check_branch
          %170 = sbr.rel (%p168) target = $region20
        $region19: #{tpu_custom_call.1} parent=11 // pred_region
          _
        $region20: #{tpu_custom_call.1} parent=11 // pred_fallthru
          _
      $region12: #{tpu_custom_call.1} parent=5 // pred_fallthru
        _
      %p171 = scmp.lt.s32.totalorder %s19, 2
      // Predicated region
      $region21: #{tpu_custom_call.1} parent=5 // pred_check
        %p172 = pneg %p171
      $region22: #{tpu_custom_call.1} parent=5 // pred_check_branch
        %174 = sbr.rel (%p172) target = $region24
      $region23: #{tpu_custom_call.1} parent=5 // pred_region
        // Predicated region
        $region25: #{tpu_custom_call.1} parent=23 // pred_check
          %p175 = pneg %p39
        $region26: #{tpu_custom_call.1} parent=23 // pred_check_branch
          %177 = sbr.rel (%p175) target = $region28
        $region27: #{tpu_custom_call.1} parent=23 // pred_region
          %s178 = sand.u32 %s29, 1
          %s179 = scalar_lea.sflag [#allocation3], %s178
          %s180 = sand.u32 %s29, 1
          %s181 = smul.addr %s180, 128
          %s182 = scalar_lea.vmem [#allocation2], %s181
          %s183 = smul.u32 16, %s19
          %185 = vsyncadd %s179, 0
          %s186 = smul.addr %s183, 8
          %s187 = scalar_lea.hbm %s0, %s186
          %s188 = sshll.u32 %s187, 4
          %s189 = int_to_ptr.hbm [resolvable:$true] %s188
          %s190 = sshll.u32 %s182, 4
          %s191 = int_to_ptr.vmem [resolvable:$true] %s190
          %196 = dma.hbm_to_vmem [thread:$0]  %s189, 2048, %s191, %s179, 128, 128, 8
        $region28: #{tpu_custom_call.1} parent=23 // pred_fallthru
          _
        // Predicated region
        $region29: #{tpu_custom_call.1} parent=23 // pred_check
          %p197 = pneg %p65
        $region30: #{tpu_custom_call.1} parent=23 // pred_check_branch
          %199 = sbr.rel (%p197) target = $region32
        $region31: #{tpu_custom_call.1} parent=23 // pred_region
          %s200 = sand.u32 %s19, 1
          %s201 = scalar_lea.sflag [#allocation6], %s200
          %s202 = sand.u32 %s55, 1
          %s203 = smul.addr %s202, 128
          %s204 = scalar_lea.vmem [#allocation5], %s203
          %s205 = smul.u32 16, %s19
          %207 = vsyncadd %s201, 0
          %s208 = smul.addr %s205, 8
          %s209 = scalar_lea.hbm %s1, %s208
          %s210 = sshll.u32 %s209, 4
          %s211 = int_to_ptr.hbm [resolvable:$true] %s210
          %s212 = sshll.u32 %s204, 4
          %s213 = int_to_ptr.vmem [resolvable:$true] %s212
          %218 = dma.hbm_to_vmem [thread:$0]  %s211, 2048, %s213, %s201, 128, 128, 8
        $region32: #{tpu_custom_call.1} parent=23 // pred_fallthru
          _
      $region24: #{tpu_custom_call.1} parent=5 // pred_fallthru
        _
      %p219 = scmp.le.s32.totalorder 1, %s19
      %p220 = scmp.lt.s32.totalorder %s19, 3
      %p221 = pnand %p219, %p220
      %p222 = pneg %p221
      // Predicated region
      $region33: #{tpu_custom_call.1} parent=5 // pred_check
        _
      $region34: #{tpu_custom_call.1} parent=5 // pred_check_branch
        %224 = sbr.rel (%p221) target = $region36
      $region35: #{tpu_custom_call.1} parent=5 // pred_region
        %s225 = ssub.s32 %s19, 1
        %s226 = sand.u32 %s32, 1
        %s227 = scalar_lea.sflag [#allocation3], %s226
        %s228 = sand.u32 %s32, 1
        %s229 = smul.addr %s228, 128
        %s230 = scalar_lea.vmem [#allocation2], %s229
        // Predicated region
        $region37: #{tpu_custom_call.1} parent=35 // pred_check
          %p231 = pneg %p45
        $region38: #{tpu_custom_call.1} parent=35 // pred_check_branch
          %233 = sbr.rel (%p231) target = $region40
        $region39: #{tpu_custom_call.1} parent=35 // pred_region
          %235 = dma.done %s227, 2048
        $region40: #{tpu_custom_call.1} parent=35 // pred_fallthru
          _
        %s236 = sand.u32 %s24, 1
        %s237 = scalar_lea.sflag [#allocation6], %s236
        %s238 = sand.u32 %s58, 1
        %s239 = smul.addr %s238, 128
        %s240 = scalar_lea.vmem [#allocation5], %s239
        // Predicated region
        $region41: #{tpu_custom_call.1} parent=35 // pred_check
          %p241 = pneg %p71
        $region42: #{tpu_custom_call.1} parent=35 // pred_check_branch
          %243 = sbr.rel (%p241) target = $region44
        $region43: #{tpu_custom_call.1} parent=35 // pred_region
          %245 = dma.done %s237, 2048
        $region44: #{tpu_custom_call.1} parent=35 // pred_fallthru
          _
        // Predicated region
        $region45: #{tpu_custom_call.1} parent=35 // pred_check
          %p246 = pneg %p92
        $region46: #{tpu_custom_call.1} parent=35 // pred_check_branch
          %248 = sbr.rel (%p246) target = $region48
        $region47: #{tpu_custom_call.1} parent=35 // pred_region
          %250 = dma.done [#allocation6], 1024
        $region48: #{tpu_custom_call.1} parent=35 // pred_fallthru
          _
        %s251 = sand.u32 %s32, 1
        %s252 = scalar_lea.sflag [#allocation3], %s251
        %s253 = sand.u32 %s32, 1
        %s254 = smul.addr %s253, 128
        %s255 = scalar_lea.vmem [#allocation2], %s254
        %p256 = pneg %p45
        %p257 = pneg %p42
        %s258 = sand.u32 %s24, 1
        %s259 = scalar_lea.sflag [#allocation6], %s258
        %s260 = sand.u32 %s58, 1
        %s261 = smul.addr %s260, 128
        %s262 = scalar_lea.vmem [#allocation5], %s261
        %p263 = pneg %p71
        %p264 = pneg %p68
        %p265 = pneg %p92
        %p266 = pneg %p89
        %p267 = pneg %p113
        %p268 = pneg %p110
        %p269 = pneg %p139
        %p270 = pneg %p136
        %s271 = sand.u32 %s126, 1
        %s272 = scalar_lea.sflag [#allocation4], %s271
        %s273 = sand.u32 %s126, 1
        %s274 = smul.addr %s273, 256
        %s275 = scalar_lea.vmem [#allocation8], %s274
        %s276 = smul.u32 16, %s24
        %s277 = smul.u32 16, %s24
        %s278 = smul.u32 16, %s24
        %v279 = vld [vmem:[%s230] sm:$0xff]
        %v280 = vld [vmem:[%s230 + $0x8] sm:$0xff]
        %v281 = vld [vmem:[%s230 + $0x10] sm:$0xff]
        %v282 = vld [vmem:[%s230 + $0x18] sm:$0xff]
        %v283 = vld [vmem:[%s230 + $0x20] sm:$0xff]
        %v284 = vld [vmem:[%s230 + $0x28] sm:$0xff]
        %v285 = vld [vmem:[%s230 + $0x30] sm:$0xff]
        %v286 = vld [vmem:[%s230 + $0x38] sm:$0xff]
        %v287 = vld [vmem:[%s230 + $0x40] sm:$0xff]
        %v288 = vld [vmem:[%s230 + $0x48] sm:$0xff]
        %v289 = vld [vmem:[%s230 + $0x50] sm:$0xff]
        %v290 = vld [vmem:[%s230 + $0x58] sm:$0xff]
        %v291 = vld [vmem:[%s230 + $0x60] sm:$0xff]
        %v292 = vld [vmem:[%s230 + $0x68] sm:$0xff]
        %v293 = vld [vmem:[%s230 + $0x70] sm:$0xff]
        %v294 = vld [vmem:[%s230 + $0x78] sm:$0xff]
        %v295 = vld [vmem:[%s240] sm:$0xff]
        %v296 = vld [vmem:[%s240 + $0x8] sm:$0xff]
        %v297 = vld [vmem:[%s240 + $0x10] sm:$0xff]
        %v298 = vld [vmem:[%s240 + $0x18] sm:$0xff]
        %v299 = vld [vmem:[%s240 + $0x20] sm:$0xff]
        %v300 = vld [vmem:[%s240 + $0x28] sm:$0xff]
        %v301 = vld [vmem:[%s240 + $0x30] sm:$0xff]
        %v302 = vld [vmem:[%s240 + $0x38] sm:$0xff]
        %v303 = vld [vmem:[%s240 + $0x40] sm:$0xff]
        %v304 = vld [vmem:[%s240 + $0x48] sm:$0xff]
        %v305 = vld [vmem:[%s240 + $0x50] sm:$0xff]
        %v306 = vld [vmem:[%s240 + $0x58] sm:$0xff]
        %v307 = vld [vmem:[%s240 + $0x60] sm:$0xff]
        %v308 = vld [vmem:[%s240 + $0x68] sm:$0xff]
        %v309 = vld [vmem:[%s240 + $0x70] sm:$0xff]
        %v310 = vld [vmem:[%s240 + $0x78] sm:$0xff]
        %v311 = vld [vmem:[#allocation7] sm:$0xf]
        %v312 = vld [vmem:[#allocation7 + $0x4] sm:$0xf]
        %v313 = vld [vmem:[#allocation7 + $0x8] sm:$0xf]
        %v314 = vld [vmem:[#allocation7 + $0xc] sm:$0xf]
        %v315 = vld [vmem:[#allocation7 + $0x10] sm:$0xf]
        %v316 = vld [vmem:[#allocation7 + $0x14] sm:$0xf]
        %v317 = vld [vmem:[#allocation7 + $0x18] sm:$0xf]
        %v318 = vld [vmem:[#allocation7 + $0x1c] sm:$0xf]
        %v319 = vld [vmem:[#allocation7 + $0x20] sm:$0xf]
        %v320 = vld [vmem:[#allocation7 + $0x24] sm:$0xf]
        %v321 = vld [vmem:[#allocation7 + $0x28] sm:$0xf]
        %v322 = vld [vmem:[#allocation7 + $0x2c] sm:$0xf]
        %v323 = vld [vmem:[#allocation7 + $0x30] sm:$0xf]
        %v324 = vld [vmem:[#allocation7 + $0x34] sm:$0xf]
        %v325 = vld [vmem:[#allocation7 + $0x38] sm:$0xf]
        %v326 = vld [vmem:[#allocation7 + $0x3c] sm:$0xf]
        %v327 = vld [vmem:[%s3] sm:$0x1]
        %v328 = vpack.c.bf16 %v280, %v279
        %v329 = vpack.c.bf16 %v282, %v281
        %v330 = vpack.c.bf16 %v284, %v283
        %v331 = vpack.c.bf16 %v286, %v285
        %v332 = vpack.c.bf16 %v288, %v287
        %v333 = vpack.c.bf16 %v290, %v289
        %v334 = vpack.c.bf16 %v292, %v291
        %v335 = vpack.c.bf16 %v294, %v293
        %v337 = vperm.slane %v327, 0
        %v355 = vunpack.c.l.b16 %v311
        %v356 = vunpack.c.l.b16 %v312
        %v357 = vunpack.c.l.b16 %v313
        %v358 = vunpack.c.l.b16 %v314
        %v359 = vunpack.c.l.b16 %v315
        %v360 = vunpack.c.l.b16 %v316
        %v361 = vunpack.c.l.b16 %v317
        %v362 = vunpack.c.l.b16 %v318
        %v363 = vunpack.c.l.b16 %v319
        %v364 = vunpack.c.l.b16 %v320
        %v365 = vunpack.c.l.b16 %v321
        %v366 = vunpack.c.l.b16 %v322
        %v367 = vunpack.c.l.b16 %v323
        %v368 = vunpack.c.l.b16 %v324
        %v369 = vunpack.c.l.b16 %v325
        %v370 = vunpack.c.l.b16 %v326
        %v371 = vpack.c.b16 %v356, %v355
        %v372 = vpack.c.b16 %v358, %v357
        %v373 = vpack.c.b16 %v360, %v359
        %v374 = vpack.c.b16 %v362, %v361
        %v375 = vpack.c.b16 %v364, %v363
        %v376 = vpack.c.b16 %v366, %v365
        %v377 = vpack.c.b16 %v368, %v367
        %v378 = vpack.c.b16 %v370, %v369
        %387 = vmatpush.bf16.msra.mxu0 %v378
        %388 = vmatpush.bf16.msra.mxu0 %v377
        %389 = vmatpush.bf16.msra.mxu0 %v376
        %390 = vmatpush.bf16.msra.mxu0 %v375
        %391 = vmatpush.bf16.msra.mxu0 %v374
        %392 = vmatpush.bf16.msra.mxu0 %v373
        %393 = vmatpush.bf16.msra.mxu0 %v372
        %394 = vmatpush.bf16.msra.mxu0 %v371
        %395 = vmatmul.bf16.gmra.mxu0 %v328
        %v396 = vpop.f32.mrf.mxu0
        %v397 = vadd.f32 %v337, %v396
        %v398 = vpop.f32.mrf.mxu0
        %v399 = vadd.f32 %v337, %v398
        %400 = vmatmul.bf16.gmra.mxu0 %v329
        %v401 = vpop.f32.mrf.mxu0
        %v402 = vadd.f32 %v337, %v401
        %v403 = vpop.f32.mrf.mxu0
        %v404 = vadd.f32 %v337, %v403
        %405 = vmatmul.bf16.gmra.mxu0 %v330
        %v406 = vpop.f32.mrf.mxu0
        %v407 = vadd.f32 %v337, %v406
        %v408 = vpop.f32.mrf.mxu0
        %v409 = vadd.f32 %v337, %v408
        %410 = vmatmul.bf16.gmra.mxu0 %v331
        %v411 = vpop.f32.mrf.mxu0
        %v412 = vadd.f32 %v337, %v411
        %v413 = vpop.f32.mrf.mxu0
        %v414 = vadd.f32 %v337, %v413
        %415 = vmatmul.bf16.gmra.mxu0 %v332
        %v416 = vpop.f32.mrf.mxu0
        %v417 = vadd.f32 %v337, %v416
        %v418 = vpop.f32.mrf.mxu0
        %v419 = vadd.f32 %v337, %v418
        %420 = vmatmul.bf16.gmra.mxu0 %v333
        %v421 = vpop.f32.mrf.mxu0
        %v422 = vadd.f32 %v337, %v421
        %v423 = vpop.f32.mrf.mxu0
        %v424 = vadd.f32 %v337, %v423
        %425 = vmatmul.bf16.gmra.mxu0 %v334
        %v426 = vpop.f32.mrf.mxu0
        %v427 = vadd.f32 %v337, %v426
        %v428 = vpop.f32.mrf.mxu0
        %v429 = vadd.f32 %v337, %v428
        %430 = vmatmul.bf16.gmra.mxu0 %v335
        %v431 = vpop.f32.mrf.mxu0
        %v432 = vadd.f32 %v337, %v431
        %v433 = vpop.f32.mrf.mxu0
        %v434 = vadd.f32 %v337, %v433
        %435 = vdwg.mxu0
        %v436 = vxor.u32 %v397, 2147483648
        %v437 = vxor.u32 %v399, 2147483648
        %v438 = vxor.u32 %v402, 2147483648
        %v439 = vxor.u32 %v404, 2147483648
        %v440 = vxor.u32 %v407, 2147483648
        %v441 = vxor.u32 %v409, 2147483648
        %v442 = vxor.u32 %v412, 2147483648
        %v443 = vxor.u32 %v414, 2147483648
        %v444 = vxor.u32 %v417, 2147483648
        %v445 = vxor.u32 %v419, 2147483648
        %v446 = vxor.u32 %v422, 2147483648
        %v447 = vxor.u32 %v424, 2147483648
        %v448 = vxor.u32 %v427, 2147483648
        %v449 = vxor.u32 %v429, 2147483648
        %v450 = vxor.u32 %v432, 2147483648
        %v451 = vxor.u32 %v434, 2147483648
        %v452 = vmul.f32 %v436, 1.442695
        %v453 = vpow.pop %v452
        %v454 = vmul.f32 %v437, 1.442695
        %v455 = vpow.pop %v454
        %v456 = vmul.f32 %v438, 1.442695
        %v457 = vpow.pop %v456
        %v458 = vmul.f32 %v439, 1.442695
        %v459 = vpow.pop %v458
        %v460 = vmul.f32 %v440, 1.442695
        %v461 = vpow.pop %v460
        %v462 = vmul.f32 %v441, 1.442695
        %v463 = vpow.pop %v462
        %v464 = vmul.f32 %v442, 1.442695
        %v465 = vpow.pop %v464
        %v466 = vmul.f32 %v443, 1.442695
        %v467 = vpow.pop %v466
        %v468 = vmul.f32 %v444, 1.442695
        %v469 = vpow.pop %v468
        %v470 = vmul.f32 %v445, 1.442695
        %v471 = vpow.pop %v470
        %v472 = vmul.f32 %v446, 1.442695
        %v473 = vpow.pop %v472
        %v474 = vmul.f32 %v447, 1.442695
        %v475 = vpow.pop %v474
        %v476 = vmul.f32 %v448, 1.442695
        %v477 = vpow.pop %v476
        %v478 = vmul.f32 %v449, 1.442695
        %v479 = vpow.pop %v478
        %v480 = vmul.f32 %v450, 1.442695
        %v481 = vpow.pop %v480
        %v482 = vmul.f32 %v451, 1.442695
        %v483 = vpow.pop %v482
        %v484 = vadd.f32 %v453, 1.0
        %v485 = vadd.f32 %v455, 1.0
        %v486 = vadd.f32 %v457, 1.0
        %v487 = vadd.f32 %v459, 1.0
        %v488 = vadd.f32 %v461, 1.0
        %v489 = vadd.f32 %v463, 1.0
        %v490 = vadd.f32 %v465, 1.0
        %v491 = vadd.f32 %v467, 1.0
        %v492 = vadd.f32 %v469, 1.0
        %v493 = vadd.f32 %v471, 1.0
        %v494 = vadd.f32 %v473, 1.0
        %v495 = vadd.f32 %v475, 1.0
        %v496 = vadd.f32 %v477, 1.0
        %v497 = vadd.f32 %v479, 1.0
        %v498 = vadd.f32 %v481, 1.0
        %v499 = vadd.f32 %v483, 1.0
        %v500 = vrcp.pop %v484
        %v501 = vmul.f32 %v484, %v500
        %v502 = vsub.f32 1.0, %v501
        %v503 = vmul.f32 %v500, %v502
        %v504 = vadd.f32 %v500, %v503
        %vm505 = vweird.f32 %v484
        %vm506 = vweird.f32 %v500
        %vm507 = vmor %vm505, %vm506
        %v508 = vsel %vm507, %v500, %v504
        %v509 = vand.u32 2147483647, %v484
        %vm510 = vcmp.eq.f32.partialorder %v509, 8.507059e+37
        %v511 = vand.u32 %v484, 2147483648
        %v512 = vor.u32 1.1754944e-38, %v511
        %v513 = vsel %vm510, %v512, %v508
        %v514 = vmul.f32 1.0, %v513
        %v515 = vrcp.pop %v485
        %v516 = vmul.f32 %v485, %v515
        %v517 = vsub.f32 1.0, %v516
        %v518 = vmul.f32 %v515, %v517
        %v519 = vadd.f32 %v515, %v518
        %vm520 = vweird.f32 %v485
        %vm521 = vweird.f32 %v515
        %vm522 = vmor %vm520, %vm521
        %v523 = vsel %vm522, %v515, %v519
        %v524 = vand.u32 2147483647, %v485
        %vm525 = vcmp.eq.f32.partialorder %v524, 8.507059e+37
        %v526 = vand.u32 %v485, 2147483648
        %v527 = vor.u32 1.1754944e-38, %v526
        %v528 = vsel %vm525, %v527, %v523
        %v529 = vmul.f32 1.0, %v528
        %v530 = vrcp.pop %v486
        %v531 = vmul.f32 %v486, %v530
        %v532 = vsub.f32 1.0, %v531
        %v533 = vmul.f32 %v530, %v532
        %v534 = vadd.f32 %v530, %v533
        %vm535 = vweird.f32 %v486
        %vm536 = vweird.f32 %v530
        %vm537 = vmor %vm535, %vm536
        %v538 = vsel %vm537, %v530, %v534
        %v539 = vand.u32 2147483647, %v486
        %vm540 = vcmp.eq.f32.partialorder %v539, 8.507059e+37
        %v541 = vand.u32 %v486, 2147483648
        %v542 = vor.u32 1.1754944e-38, %v541
        %v543 = vsel %vm540, %v542, %v538
        %v544 = vmul.f32 1.0, %v543
        %v545 = vrcp.pop %v487
        %v546 = vmul.f32 %v487, %v545
        %v547 = vsub.f32 1.0, %v546
        %v548 = vmul.f32 %v545, %v547
        %v549 = vadd.f32 %v545, %v548
        %vm550 = vweird.f32 %v487
        %vm551 = vweird.f32 %v545
        %vm552 = vmor %vm550, %vm551
        %v553 = vsel %vm552, %v545, %v549
        %v554 = vand.u32 2147483647, %v487
        %vm555 = vcmp.eq.f32.partialorder %v554, 8.507059e+37
        %v556 = vand.u32 %v487, 2147483648
        %v557 = vor.u32 1.1754944e-38, %v556
        %v558 = vsel %vm555, %v557, %v553
        %v559 = vmul.f32 1.0, %v558
        %v560 = vrcp.pop %v488
        %v561 = vmul.f32 %v488, %v560
        %v562 = vsub.f32 1.0, %v561
        %v563 = vmul.f32 %v560, %v562
        %v564 = vadd.f32 %v560, %v563
        %vm565 = vweird.f32 %v488
        %vm566 = vweird.f32 %v560
        %vm567 = vmor %vm565, %vm566
        %v568 = vsel %vm567, %v560, %v564
        %v569 = vand.u32 2147483647, %v488
        %vm570 = vcmp.eq.f32.partialorder %v569, 8.507059e+37
        %v571 = vand.u32 %v488, 2147483648
        %v572 = vor.u32 1.1754944e-38, %v571
        %v573 = vsel %vm570, %v572, %v568
        %v574 = vmul.f32 1.0, %v573
        %v575 = vrcp.pop %v489
        %v576 = vmul.f32 %v489, %v575
        %v577 = vsub.f32 1.0, %v576
        %v578 = vmul.f32 %v575, %v577
        %v579 = vadd.f32 %v575, %v578
        %vm580 = vweird.f32 %v489
        %vm581 = vweird.f32 %v575
        %vm582 = vmor %vm580, %vm581
        %v583 = vsel %vm582, %v575, %v579
        %v584 = vand.u32 2147483647, %v489
        %vm585 = vcmp.eq.f32.partialorder %v584, 8.507059e+37
        %v586 = vand.u32 %v489, 2147483648
        %v587 = vor.u32 1.1754944e-38, %v586
        %v588 = vsel %vm585, %v587, %v583
        %v589 = vmul.f32 1.0, %v588
        %v590 = vrcp.pop %v490
        %v591 = vmul.f32 %v490, %v590
        %v592 = vsub.f32 1.0, %v591
        %v593 = vmul.f32 %v590, %v592
        %v594 = vadd.f32 %v590, %v593
        %vm595 = vweird.f32 %v490
        %vm596 = vweird.f32 %v590
        %vm597 = vmor %vm595, %vm596
        %v598 = vsel %vm597, %v590, %v594
        %v599 = vand.u32 2147483647, %v490
        %vm600 = vcmp.eq.f32.partialorder %v599, 8.507059e+37
        %v601 = vand.u32 %v490, 2147483648
        %v602 = vor.u32 1.1754944e-38, %v601
        %v603 = vsel %vm600, %v602, %v598
        %v604 = vmul.f32 1.0, %v603
        %v605 = vrcp.pop %v491
        %v606 = vmul.f32 %v491, %v605
        %v607 = vsub.f32 1.0, %v606
        %v608 = vmul.f32 %v605, %v607
        %v609 = vadd.f32 %v605, %v608
        %vm610 = vweird.f32 %v491
        %vm611 = vweird.f32 %v605
        %vm612 = vmor %vm610, %vm611
        %v613 = vsel %vm612, %v605, %v609
        %v614 = vand.u32 2147483647, %v491
        %vm615 = vcmp.eq.f32.partialorder %v614, 8.507059e+37
        %v616 = vand.u32 %v491, 2147483648
        %v617 = vor.u32 1.1754944e-38, %v616
        %v618 = vsel %vm615, %v617, %v613
        %v619 = vmul.f32 1.0, %v618
        %v620 = vrcp.pop %v492
        %v621 = vmul.f32 %v492, %v620
        %v622 = vsub.f32 1.0, %v621
        %v623 = vmul.f32 %v620, %v622
        %v624 = vadd.f32 %v620, %v623
        %vm625 = vweird.f32 %v492
        %vm626 = vweird.f32 %v620
        %vm627 = vmor %vm625, %vm626
        %v628 = vsel %vm627, %v620, %v624
        %v629 = vand.u32 2147483647, %v492
        %vm630 = vcmp.eq.f32.partialorder %v629, 8.507059e+37
        %v631 = vand.u32 %v492, 2147483648
        %v632 = vor.u32 1.1754944e-38, %v631
        %v633 = vsel %vm630, %v632, %v628
        %v634 = vmul.f32 1.0, %v633
        %v635 = vrcp.pop %v493
        %v636 = vmul.f32 %v493, %v635
        %v637 = vsub.f32 1.0, %v636
        %v638 = vmul.f32 %v635, %v637
        %v639 = vadd.f32 %v635, %v638
        %vm640 = vweird.f32 %v493
        %vm641 = vweird.f32 %v635
        %vm642 = vmor %vm640, %vm641
        %v643 = vsel %vm642, %v635, %v639
        %v644 = vand.u32 2147483647, %v493
        %vm645 = vcmp.eq.f32.partialorder %v644, 8.507059e+37
        %v646 = vand.u32 %v493, 2147483648
        %v647 = vor.u32 1.1754944e-38, %v646
        %v648 = vsel %vm645, %v647, %v643
        %v649 = vmul.f32 1.0, %v648
        %v650 = vrcp.pop %v494
        %v651 = vmul.f32 %v494, %v650
        %v652 = vsub.f32 1.0, %v651
        %v653 = vmul.f32 %v650, %v652
        %v654 = vadd.f32 %v650, %v653
        %vm655 = vweird.f32 %v494
        %vm656 = vweird.f32 %v650
        %vm657 = vmor %vm655, %vm656
        %v658 = vsel %vm657, %v650, %v654
        %v659 = vand.u32 2147483647, %v494
        %vm660 = vcmp.eq.f32.partialorder %v659, 8.507059e+37
        %v661 = vand.u32 %v494, 2147483648
        %v662 = vor.u32 1.1754944e-38, %v661
        %v663 = vsel %vm660, %v662, %v658
        %v664 = vmul.f32 1.0, %v663
        %v665 = vrcp.pop %v495
        %v666 = vmul.f32 %v495, %v665
        %v667 = vsub.f32 1.0, %v666
        %v668 = vmul.f32 %v665, %v667
        %v669 = vadd.f32 %v665, %v668
        %vm670 = vweird.f32 %v495
        %vm671 = vweird.f32 %v665
        %vm672 = vmor %vm670, %vm671
        %v673 = vsel %vm672, %v665, %v669
        %v674 = vand.u32 2147483647, %v495
        %vm675 = vcmp.eq.f32.partialorder %v674, 8.507059e+37
        %v676 = vand.u32 %v495, 2147483648
        %v677 = vor.u32 1.1754944e-38, %v676
        %v678 = vsel %vm675, %v677, %v673
        %v679 = vmul.f32 1.0, %v678
        %v680 = vrcp.pop %v496
        %v681 = vmul.f32 %v496, %v680
        %v682 = vsub.f32 1.0, %v681
        %v683 = vmul.f32 %v680, %v682
        %v684 = vadd.f32 %v680, %v683
        %vm685 = vweird.f32 %v496
        %vm686 = vweird.f32 %v680
        %vm687 = vmor %vm685, %vm686
        %v688 = vsel %vm687, %v680, %v684
        %v689 = vand.u32 2147483647, %v496
        %vm690 = vcmp.eq.f32.partialorder %v689, 8.507059e+37
        %v691 = vand.u32 %v496, 2147483648
        %v692 = vor.u32 1.1754944e-38, %v691
        %v693 = vsel %vm690, %v692, %v688
        %v694 = vmul.f32 1.0, %v693
        %v695 = vrcp.pop %v497
        %v696 = vmul.f32 %v497, %v695
        %v697 = vsub.f32 1.0, %v696
        %v698 = vmul.f32 %v695, %v697
        %v699 = vadd.f32 %v695, %v698
        %vm700 = vweird.f32 %v497
        %vm701 = vweird.f32 %v695
        %vm702 = vmor %vm700, %vm701
        %v703 = vsel %vm702, %v695, %v699
        %v704 = vand.u32 2147483647, %v497
        %vm705 = vcmp.eq.f32.partialorder %v704, 8.507059e+37
        %v706 = vand.u32 %v497, 2147483648
        %v707 = vor.u32 1.1754944e-38, %v706
        %v708 = vsel %vm705, %v707, %v703
        %v709 = vmul.f32 1.0, %v708
        %v710 = vrcp.pop %v498
        %v711 = vmul.f32 %v498, %v710
        %v712 = vsub.f32 1.0, %v711
        %v713 = vmul.f32 %v710, %v712
        %v714 = vadd.f32 %v710, %v713
        %vm715 = vweird.f32 %v498
        %vm716 = vweird.f32 %v710
        %vm717 = vmor %vm715, %vm716
        %v718 = vsel %vm717, %v710, %v714
        %v719 = vand.u32 2147483647, %v498
        %vm720 = vcmp.eq.f32.partialorder %v719, 8.507059e+37
        %v721 = vand.u32 %v498, 2147483648
        %v722 = vor.u32 1.1754944e-38, %v721
        %v723 = vsel %vm720, %v722, %v718
        %v724 = vmul.f32 1.0, %v723
        %v725 = vrcp.pop %v499
        %v726 = vmul.f32 %v499, %v725
        %v727 = vsub.f32 1.0, %v726
        %v728 = vmul.f32 %v725, %v727
        %v729 = vadd.f32 %v725, %v728
        %vm730 = vweird.f32 %v499
        %vm731 = vweird.f32 %v725
        %vm732 = vmor %vm730, %vm731
        %v733 = vsel %vm732, %v725, %v729
        %v734 = vand.u32 2147483647, %v499
        %vm735 = vcmp.eq.f32.partialorder %v734, 8.507059e+37
        %v736 = vand.u32 %v499, 2147483648
        %v737 = vor.u32 1.1754944e-38, %v736
        %v738 = vsel %vm735, %v737, %v733
        %v739 = vmul.f32 1.0, %v738
        %v740 = vadd.f32 %v295, %v514
        %v741 = vadd.f32 %v296, %v529
        %v742 = vadd.f32 %v297, %v544
        %v743 = vadd.f32 %v298, %v559
        %v744 = vadd.f32 %v299, %v574
        %v745 = vadd.f32 %v300, %v589
        %v746 = vadd.f32 %v301, %v604
        %v747 = vadd.f32 %v302, %v619
        %v748 = vadd.f32 %v303, %v634
        %v749 = vadd.f32 %v304, %v649
        %v750 = vadd.f32 %v305, %v664
        %v751 = vadd.f32 %v306, %v679
        %v752 = vadd.f32 %v307, %v694
        %v753 = vadd.f32 %v308, %v709
        %v754 = vadd.f32 %v309, %v724
        %v755 = vadd.f32 %v310, %v739
        %v756 = vtanh.pop %v279
        %v757 = vtanh.pop %v280
        %v758 = vtanh.pop %v281
        %v759 = vtanh.pop %v282
        %v760 = vtanh.pop %v283
        %v761 = vtanh.pop %v284
        %v762 = vtanh.pop %v285
        %v763 = vtanh.pop %v286
        %v764 = vtanh.pop %v287
        %v765 = vtanh.pop %v288
        %v766 = vtanh.pop %v289
        %v767 = vtanh.pop %v290
        %v768 = vtanh.pop %v291
        %v769 = vtanh.pop %v292
        %v770 = vtanh.pop %v293
        %v771 = vtanh.pop %v294
        %v772 = vtanh.pop %v740
        %v773 = vtanh.pop %v741
        %v774 = vtanh.pop %v742
        %v775 = vtanh.pop %v743
        %v776 = vtanh.pop %v744
        %v777 = vtanh.pop %v745
        %v778 = vtanh.pop %v746
        %v779 = vtanh.pop %v747
        %v780 = vtanh.pop %v748
        %v781 = vtanh.pop %v749
        %v782 = vtanh.pop %v750
        %v783 = vtanh.pop %v751
        %v784 = vtanh.pop %v752
        %v785 = vtanh.pop %v753
        %v786 = vtanh.pop %v754
        %v787 = vtanh.pop %v755
        %788 = vst [vmem:[%s275] sm:$0xff] %v756
        %789 = vst [vmem:[%s275 + $0x10] sm:$0xff] %v757
        %790 = vst [vmem:[%s275 + $0x20] sm:$0xff] %v758
        %791 = vst [vmem:[%s275 + $0x30] sm:$0xff] %v759
        %792 = vst [vmem:[%s275 + $0x40] sm:$0xff] %v760
        %793 = vst [vmem:[%s275 + $0x50] sm:$0xff] %v761
        %794 = vst [vmem:[%s275 + $0x60] sm:$0xff] %v762
        %795 = vst [vmem:[%s275 + $0x70] sm:$0xff] %v763
        %796 = vst [vmem:[%s275 + $0x80] sm:$0xff] %v764
        %797 = vst [vmem:[%s275 + $0x90] sm:$0xff] %v765
        %798 = vst [vmem:[%s275 + $0xa0] sm:$0xff] %v766
        %799 = vst [vmem:[%s275 + $0xb0] sm:$0xff] %v767
        %800 = vst [vmem:[%s275 + $0xc0] sm:$0xff] %v768
        %801 = vst [vmem:[%s275 + $0xd0] sm:$0xff] %v769
        %802 = vst [vmem:[%s275 + $0xe0] sm:$0xff] %v770
        %803 = vst [vmem:[%s275 + $0xf0] sm:$0xff] %v771
        %804 = vst [vmem:[%s275 + $0x8] sm:$0xff] %v772
        %805 = vst [vmem:[%s275 + $0x18] sm:$0xff] %v773
        %806 = vst [vmem:[%s275 + $0x28] sm:$0xff] %v774
        %807 = vst [vmem:[%s275 + $0x38] sm:$0xff] %v775
        %808 = vst [vmem:[%s275 + $0x48] sm:$0xff] %v776
        %809 = vst [vmem:[%s275 + $0x58] sm:$0xff] %v777
        %810 = vst [vmem:[%s275 + $0x68] sm:$0xff] %v778
        %811 = vst [vmem:[%s275 + $0x78] sm:$0xff] %v779
        %812 = vst [vmem:[%s275 + $0x88] sm:$0xff] %v780
        %813 = vst [vmem:[%s275 + $0x98] sm:$0xff] %v781
        %814 = vst [vmem:[%s275 + $0xa8] sm:$0xff] %v782
        %815 = vst [vmem:[%s275 + $0xb8] sm:$0xff] %v783
        %816 = vst [vmem:[%s275 + $0xc8] sm:$0xff] %v784
        %817 = vst [vmem:[%s275 + $0xd8] sm:$0xff] %v785
        %818 = vst [vmem:[%s275 + $0xe8] sm:$0xff] %v786
        %819 = vst [vmem:[%s275 + $0xf8] sm:$0xff] %v787
        %s820 = sand.u32 %s126, 1
        %s821 = scalar_lea.sflag [#allocation4], %s820
        %s822 = sand.u32 %s126, 1
        %s823 = smul.addr %s822, 256
        %s824 = scalar_lea.vmem [#allocation8], %s823
        // Predicated region
        $region49: #{tpu_custom_call.1} parent=35 // pred_check
          %p825 = pneg %p136
        $region50: #{tpu_custom_call.1} parent=35 // pred_check_branch
          %827 = sbr.rel (%p825) target = $region52
        $region51: #{tpu_custom_call.1} parent=35 // pred_region
          %s828 = smul.u32 16, %s24
          %830 = vsyncadd %s821, 0
          %s831 = smul.addr %s828, 2
          %s832 = smul.addr %s831, 8
          %s833 = scalar_lea.hbm %s4, %s832
          %s834 = sshll.u32 %s824, 4
          %s835 = int_to_ptr.vmem [resolvable:$true] %s834
          %s836 = sshll.u32 %s833, 4
          %s837 = int_to_ptr.hbm [resolvable:$true] %s836
          %842 = dma.vmem_to_hbm [thread:$0]  %s835, 4096, %s837, %s821, 256, 256, 16
        $region52: #{tpu_custom_call.1} parent=35 // pred_fallthru
          _
      $region36: #{tpu_custom_call.1} parent=5 // pred_fallthru
        _
      %p843 = scmp.le.s32.totalorder 2, %s19
      // Predicated region
      $region53: #{tpu_custom_call.1} parent=5 // pred_check
        %p844 = pneg %p843
      $region54: #{tpu_custom_call.1} parent=5 // pred_check_branch
        %846 = sbr.rel (%p844) target = $region56
      $region55: #{tpu_custom_call.1} parent=5 // pred_region
        %s847 = ssub.s32 %s19, 2
        // Predicated region
        $region57: #{tpu_custom_call.1} parent=55 // pred_check
          %p848 = pneg %p142
        $region58: #{tpu_custom_call.1} parent=55 // pred_check_branch
          %850 = sbr.rel (%p848) target = $region60
        $region59: #{tpu_custom_call.1} parent=55 // pred_region
          %s851 = sand.u32 %s127, 1
          %s852 = scalar_lea.sflag [#allocation4], %s851
          %s853 = sand.u32 %s127, 1
          %s854 = smul.addr %s853, 256
          %s855 = scalar_lea.vmem [#allocation8], %s854
          %857 = dma.done %s852, 4096
        $region60: #{tpu_custom_call.1} parent=55 // pred_fallthru
          _
      $region56: #{tpu_custom_call.1} parent=5 // pred_fallthru
        _
    $region6: #{tpu_custom_call.1} parent=1 // loop_footer
      %s23 = sadd.s32 1, %s19
    $region7: #{tpu_custom_call.1} parent=1 // loop_footer_branch
      %18 = sbr.rel target = $region3
    $region8: #{tpu_custom_call.1} parent=1 // loop_exit
      _
    %858 = vsyncpa [#allocation3], 1
    %s859 = scalar_lea.sflag [#allocation3], 1
    %860 = vsyncpa %s859, 1
    %861 = vsyncpa [#allocation6], 1
    %s862 = scalar_lea.sflag [#allocation6], 1
    %863 = vsyncpa %s862, 1
    %864 = vsyncpa [#allocation4], 1
    %s865 = scalar_lea.sflag [#allocation4], 1
    %866 = vsyncpa %s865, 1

</llo_original>
